<compile_context>
chip_gen: v7x
topology: tpu7x:2x2x1
jax: 0.10.0
libtpu: 0.0.40
codegen_flags: <defaults>
</compile_context>

<pallas_src>
import functools

import jax
import jax.numpy as jnp
from jax.experimental import pallas as pl
from jax.experimental.pallas import tpu as pltpu


def _round_up(x, m):
    return ((x + m - 1) // m) * m


def _conv1d_kernel(xm_ref, xh_ref, w_ref, b_ref, m_ref, o_ref, *, K, tile_T):
    # xm_ref: (1, tile_T, C_in_p)   main temporal tile
    # xh_ref: (1, halo8,  C_in_p)   halo rows (head of the next tile)
    # w_ref : (K*C_in_p, C_out_p)   taps stacked along the contraction dim
    # b_ref : (1, C_out_p)
    # m_ref : (1, tile_T, 1)
    # o_ref : (1, tile_T, C_out_p)
    xw = jnp.concatenate([xm_ref[0], xh_ref[0]], axis=0)   # (tile_T+halo8, C_in_p)
    # im2col fold: one lane-concat slab, then a single MXU matmul with a
    # K*C_in_p-wide contraction (instead of K skinny matmuls).
    cols = jnp.concatenate([xw[k:k + tile_T, :] for k in range(K)], axis=-1)
    acc = jnp.dot(cols, w_ref[...], preferred_element_type=jnp.float32)
    acc = acc + b_ref[...]          # (1, C_out_p) broadcast
    acc = acc * m_ref[0]            # (tile_T, 1) broadcast over lanes
    o_ref[0] = acc.astype(o_ref.dtype)


@functools.partial(jax.jit, static_argnames=("kernel_size", "padding", "max_tile_t"))
def conv1d_encoder_forward(input_emb, input_mask, weight, bias, *,
                           kernel_size, padding, max_tile_t=256):
    """input_emb: (B, T, C_in) f32; input_mask: (B, T) f32
       weight: (C_out, C_in, K)  (nn.Conv1d layout); bias: (C_out,)"""
    assert padding in ("valid", "same")
    B, T, C_in = input_emb.shape
    C_out = weight.shape[0]
    K = kernel_size

    # Output temporal length. For 'same' _pad_input zero-pads asymmetrically.
    same = (padding == "same" and K > 1)
    T_out = T if (padding == "same" or K == 1) else T - (K - 1)
    left = (K - 1) // 2 if same else 0

    # ---- tiling ----------------------------------------------------------
    halo8 = max(8, _round_up(K - 1, 8))            # sublane-aligned halo rows
    tile_cap = _round_up(max_tile_t, halo8)
    tile_T = min(tile_cap, _round_up(T_out, halo8))
    assert tile_T % halo8 == 0
    n_t = -(-T_out // tile_T)
    T_out_pad = n_t * tile_T
    T_in_pad = n_t * tile_T + halo8                # main tiles + trailing halo
    C_in_p = _round_up(C_in, 128)                  # lane-dense contraction
    C_out_p = _round_up(C_out, 128)                # lane-dense output stores
    halo_stride = tile_T // halo8

    # ---- wrapper-side layout glue (one pad copy per tensor) --------------
    right = T_in_pad - T - left
    x = jnp.pad(input_emb, ((0, 0), (left, right), (0, C_in_p - C_in)))
    w = jnp.transpose(weight, (2, 1, 0))                        # (K, C_in, C_out)
    w = jnp.pad(w, ((0, 0), (0, C_in_p - C_in), (0, C_out_p - C_out)))
    w = w.reshape(K * C_in_p, C_out_p)
    b = jnp.pad(bias, (0, C_out_p - C_out)).reshape(1, C_out_p)
    m = input_mask[:, :T_out].astype(input_emb.dtype)
    m = jnp.pad(m, ((0, 0), (0, T_out_pad - T_out)))[..., None]  # (B, T_out_pad, 1)

    kernel = functools.partial(_conv1d_kernel, K=K, tile_T=tile_T)

    cost = pl.CostEstimate(
        flops=2 * B * n_t * tile_T * (K * C_in_p) * C_out_p,
        transcendentals=0,
        bytes_accessed=4 * (B * T_in_pad * C_in_p + K * C_in_p * C_out_p
                            + C_out_p + B * T_out_pad * (1 + C_out_p)),
    )

    out = pl.pallas_call(
        kernel,
        out_shape=jax.ShapeDtypeStruct((B, T_out_pad, C_out_p), input_emb.dtype),
        grid_spec=pltpu.PrefetchScalarGridSpec(
            num_scalar_prefetch=0,
            grid=(B, n_t),
            in_specs=[
                # main temporal tile
                pl.BlockSpec((1, tile_T, C_in_p), lambda bi, ti: (bi, ti, 0)),
                # halo rows = head of the next tile (same array, small block)
                pl.BlockSpec((1, halo8, C_in_p),
                             lambda bi, ti: (bi, (ti + 1) * halo_stride, 0)),
                # weights / bias: resident, constant index
                pl.BlockSpec((K * C_in_p, C_out_p), lambda bi, ti: (0, 0)),
                pl.BlockSpec((1, C_out_p), lambda bi, ti: (0, 0)),
                # mask tile
                pl.BlockSpec((1, tile_T, 1), lambda bi, ti: (bi, ti, 0)),
            ],
            out_specs=pl.BlockSpec((1, tile_T, C_out_p),
                                   lambda bi, ti: (bi, ti, 0)),
        ),
        compiler_params=pltpu.CompilerParams(
            dimension_semantics=("parallel", "parallel"),
            vmem_limit_bytes=32 * 1024 * 1024,
        ),
        cost_estimate=cost,
    )(x, x, w, b, m)

    return out[:, :T_out, :C_out]


def _reference(input_emb, input_mask, weight, bias, *, kernel_size, padding):
    # Pure-JAX reference using lax.conv_general_dilated on NCW layout.
    K = kernel_size
    x = jnp.transpose(input_emb, (0, 2, 1))     # (B, C_in, T)
    if padding == "same" and K > 1:
        pad = K - 1
        if pad % 2 == 0:
            pads = [(pad // 2, pad // 2)]
        else:
            pads = [(pad // 2, pad // 2 + 1)]
    else:
        pads = [(0, 0)]
    y = jax.lax.conv_general_dilated(
        x, weight, window_strides=(1,), padding=pads,
        dimension_numbers=("NCH", "OIH", "NCH"))
    y = y + bias[None, :, None]
    y = jnp.transpose(y, (0, 2, 1))             # (B, T_out, C_out)
    T_out = y.shape[1]
    return y * input_mask[:, :T_out, None]


if __name__ == "__main__":
    key = jax.random.PRNGKey(0)
    B, T, C_in, C_out, K = 2, 16, 8, 16, 3

    k1, k2, k3, k4, k5, k6 = jax.random.split(key, 6)
    input_emb = jax.random.normal(k1, (B, T, C_in), dtype=jnp.float32)
    input_mask = (jax.random.uniform(k2, (B, T)) > 0.3).astype(jnp.float32)
    bound = 1.0 / (C_in * K) ** 0.5
    weight = jax.random.uniform(k3, (C_out, C_in, K), minval=-bound, maxval=bound,
                                dtype=jnp.float32)
    bias = jax.random.uniform(k4, (C_out,), minval=-bound, maxval=bound,
                              dtype=jnp.float32)

    # 1) 'same' padding, single temporal tile
    out = conv1d_encoder_forward(input_emb, input_mask, weight, bias,
                                 kernel_size=K, padding="same")
    out = jax.block_until_ready(out)
    ref = _reference(input_emb, input_mask, weight, bias,
                     kernel_size=K, padding="same")
    assert out.shape == (B, T, C_out)
    assert jnp.allclose(out, ref, atol=1e-5, rtol=1e-5)

    # 2) 'valid' padding (mask sliced to the conv output length, as before)
    out_v = conv1d_encoder_forward(input_emb, input_mask, weight, bias,
                                   kernel_size=K, padding="valid")
    out_v = jax.block_until_ready(out_v)
    ref_v = _reference(input_emb, input_mask, weight, bias,
                       kernel_size=K, padding="valid")
    assert out_v.shape == (B, T - K + 1, C_out)
    assert jnp.allclose(out_v, ref_v, atol=1e-5, rtol=1e-5)

    # 3) multi-tile temporal path (exercise the halo across tile boundaries)
    T3 = 48
    x3 = jax.random.normal(k5, (B, T3, C_in), dtype=jnp.float32)
    m3 = (jax.random.uniform(k6, (B, T3)) > 0.3).astype(jnp.float32)
    out3 = conv1d_encoder_forward(x3, m3, weight, bias,
                                  kernel_size=K, padding="same", max_tile_t=16)
    out3 = jax.block_until_ready(out3)
    ref3 = _reference(x3, m3, weight, bias, kernel_size=K, padding="same")
    assert out3.shape == (B, T3, C_out)
    assert jnp.allclose(out3, ref3, atol=1e-5, rtol=1e-5)

    print("KERNEL_OK")
</pallas_src>

<mosaic_0001>
module attributes {stable_mosaic.version = 11 : i64} {
  func.func @_conv1d_kernel(%arg0: i32, %arg1: i32, %arg2: memref<1x16x128xf32, #tpu.memory_space<vmem>>, %arg3: memref<1x8x128xf32, #tpu.memory_space<vmem>>, %arg4: memref<384x128xf32, #tpu.memory_space<vmem>>, %arg5: memref<1x128xf32, #tpu.memory_space<vmem>>, %arg6: memref<1x16x1xf32, #tpu.memory_space<vmem>>, %arg7: memref<1x16x128xf32, #tpu.memory_space<vmem>>) attributes {dimension_semantics = [#tpu.dimension_semantics<parallel>, #tpu.dimension_semantics<parallel>], iteration_bounds = array<i64: 2, 1>, scalar_prefetch = 0 : i64, scratch_operands = 0 : i64, tpu.core_type = #tpu.core_type<tc>, window_params = [{transform_indices = @transform_0, window_bounds = array<i64: 1, 16, 128>}, {transform_indices = @transform_1, window_bounds = array<i64: 1, 8, 128>}, {pipeline_mode = #tpu.pipeline_mode<synchronous>, transform_indices = @transform_2, window_bounds = array<i64: 384, 128>}, {pipeline_mode = #tpu.pipeline_mode<synchronous>, transform_indices = @transform_3, window_bounds = array<i64: 1, 128>}, {transform_indices = @transform_4, window_bounds = array<i64: 1, 16, 1>}, {transform_indices = @transform_5, window_bounds = array<i64: 1, 16, 128>}]} {
    %c0 = arith.constant 0 : index
    %c0_0 = arith.constant 0 : index
    %c0_1 = arith.constant 0 : index
    %0 = vector.load %arg2[%c0, %c0_0, %c0_1] : memref<1x16x128xf32, #tpu.memory_space<vmem>>, vector<1x16x128xf32>
    %1 = vector.shape_cast %0 : vector<1x16x128xf32> to vector<16x128xf32>
    %c0_2 = arith.constant 0 : index
    %c0_3 = arith.constant 0 : index
    %c0_4 = arith.constant 0 : index
    %2 = vector.load %arg3[%c0_2, %c0_3, %c0_4] : memref<1x8x128xf32, #tpu.memory_space<vmem>>, vector<1x8x128xf32>
    %3 = vector.shape_cast %2 : vector<1x8x128xf32> to vector<8x128xf32>
    %4 = tpu.concatenate %1, %3 in 0 : vector<16x128xf32>, vector<8x128xf32> -> vector<24x128xf32>
    %5 = vector.extract_strided_slice %4 {offsets = [0, 0], sizes = [16, 128], strides = [1, 1]} : vector<24x128xf32> to vector<16x128xf32>
    %6 = vector.extract_strided_slice %4 {offsets = [1, 0], sizes = [16, 128], strides = [1, 1]} : vector<24x128xf32> to vector<16x128xf32>
    %7 = vector.extract_strided_slice %4 {offsets = [2, 0], sizes = [16, 128], strides = [1, 1]} : vector<24x128xf32> to vector<16x128xf32>
    %8 = tpu.concatenate %5, %6, %7 in 1 : vector<16x128xf32>, vector<16x128xf32>, vector<16x128xf32> -> vector<16x384xf32>
    %c0_5 = arith.constant 0 : index
    %c0_6 = arith.constant 0 : index
    %9 = vector.load %arg4[%c0_5, %c0_6] : memref<384x128xf32, #tpu.memory_space<vmem>>, vector<384x128xf32>
    %cst = arith.constant dense<0.000000e+00> : vector<16x128xf32>
    %10 = tpu.matmul %8, %9, %cst {dimension_numbers = #tpu.dot_dimension_numbers<[1], [0], [0], [1], [0, 0, 1, 1], [], []>} : vector<16x384xf32>, vector<384x128xf32>, vector<16x128xf32> -> vector<16x128xf32>
    %c0_7 = arith.constant 0 : index
    %c0_8 = arith.constant 0 : index
    %11 = vector.load %arg5[%c0_7, %c0_8] : memref<1x128xf32, #tpu.memory_space<vmem>>, vector<1x128xf32>
    %12 = vector.broadcast %11 : vector<1x128xf32> to vector<16x128xf32>
    %13 = arith.addf %10, %12 : vector<16x128xf32>
    %c0_9 = arith.constant 0 : index
    %c0_10 = arith.constant 0 : index
    %c0_11 = arith.constant 0 : index
    %14 = vector.load %arg6[%c0_9, %c0_10, %c0_11] : memref<1x16x1xf32, #tpu.memory_space<vmem>>, vector<1x16x1xf32>
    %15 = vector.shape_cast %14 : vector<1x16x1xf32> to vector<16x1xf32>
    %16 = vector.broadcast %15 : vector<16x1xf32> to vector<16x128xf32>
    %17 = arith.mulf %13, %16 : vector<16x128xf32>
    %c0_12 = arith.constant 0 : index
    %c0_13 = arith.constant 0 : index
    %c0_14 = arith.constant 0 : index
    %18 = vector.load %arg7[%c0_12, %c0_13, %c0_14] : memref<1x16x128xf32, #tpu.memory_space<vmem>>, vector<1x16x128xf32>
    %19 = vector.shape_cast %18 : vector<1x16x128xf32> to vector<16x128xf32>
    %20 = vector.shape_cast %17 : vector<16x128xf32> to vector<1x16x128xf32>
    tpu.vector_store %arg7[%c0_12, %c0_13, %c0_14], %20 {strides = array<i32>} : memref<1x16x128xf32, #tpu.memory_space<vmem>>, vector<1x16x128xf32>,
    return
  }
  func.func @transform_0(%arg0: i32, %arg1: i32) -> (i32, i32, i32) {
    %c0_i32 = arith.constant 0 : i32
    %c0_i32_0 = arith.constant 0 : i32
    return %arg0, %arg1, %c0_i32 : i32, i32, i32
  }
  func.func @transform_1(%arg0: i32, %arg1: i32) -> (i32, i32, i32) {
    %c1_i32 = arith.constant 1 : i32
    %0 = arith.addi %arg1, %c1_i32 : i32
    %c2_i32 = arith.constant 2 : i32
    %1 = arith.muli %0, %c2_i32 : i32
    %c0_i32 = arith.constant 0 : i32
    %c0_i32_0 = arith.constant 0 : i32
    return %arg0, %1, %c0_i32 : i32, i32, i32
  }
  func.func @transform_2(%arg0: i32, %arg1: i32) -> (i32, i32) {
    %c0_i32 = arith.constant 0 : i32
    %c0_i32_0 = arith.constant 0 : i32
    %c0_i32_1 = arith.constant 0 : i32
    return %c0_i32, %c0_i32_0 : i32, i32
  }
  func.func @transform_3(%arg0: i32, %arg1: i32) -> (i32, i32) {
    %c0_i32 = arith.constant 0 : i32
    %c0_i32_0 = arith.constant 0 : i32
    %c0_i32_1 = arith.constant 0 : i32
    return %c0_i32, %c0_i32_0 : i32, i32
  }
  func.func @transform_4(%arg0: i32, %arg1: i32) -> (i32, i32, i32) {
    %c0_i32 = arith.constant 0 : i32
    %c0_i32_0 = arith.constant 0 : i32
    return %arg0, %arg1, %c0_i32 : i32, i32, i32
  }
  func.func @transform_5(%arg0: i32, %arg1: i32) -> (i32, i32, i32) {
    %c0_i32 = arith.constant 0 : i32
    %c0_i32_0 = arith.constant 0 : i32
    return %arg0, %arg1, %c0_i32 : i32, i32, i32
  }
}

</mosaic_0001>

<llo_original>
// kernel: conv1d_encoder_forward.1
$region0: #{conv1d_encoder_forward.1}
  #allocation0 [shape = 'u32[]', space=smem, size = 0x4, offset = 0x4, fixed_abs, tag = 'smem constant byte address 0x4 - core index']
  #allocation1 [shape = 'u32[144,128]{1,0:T(1,128)}', space=vmem, size = 0x12000, scoped, tag = 'internal scratch']
  %s0 = inlined_call_operand.vmem [shape: f32[2,24,128], index: 0, kind: input, shape index: {}, may-alias: {0,1}]
  %s1 = inlined_call_operand.vmem [shape: f32[2,24,128], index: 1, kind: input, shape index: {}, may-alias: {0,1}]
  %s2 = inlined_call_operand.vmem [shape: f32[384,128], index: 2, kind: input, shape index: {}]
  %s3 = inlined_call_operand.vmem [shape: f32[1,128], index: 3, kind: input, shape index: {}]
  %s4 = inlined_call_operand.vmem [shape: f32[2,16,1], index: 4, kind: input, shape index: {}]
  %s5 = inlined_call_operand.hbm [shape: f32[2,16,128], index: 5, kind: output, shape index: {}]
  %s6 = sld [smem:[#allocation0]]
  $region53: #{conv1d_encoder_forward.1} parent=0
    _
  %s8 = ssub.s32 1, %s6
  %s9 = scalar_select 0, %s8, %s6
  $region1: #{conv1d_encoder_forward.1} parent=0
    #allocation2 [shape = 'u8[16384]{0}', space=vmem, size = 0x4000, scoped, tag = 'output window, operand 0']
    #allocation3 [shape = 's32[2]{0}', space=sflag, size = 0x8, scoped, tag = 'scoped memory for conv1d_encoder_forward.1']
    %10 = vsyncpa [#allocation3], 0
    %s11 = scalar_lea.sflag [#allocation3], 1
    %12 = vsyncpa %s11, 0
    loop: start=0, step=1, limit=4
    $region2: #{conv1d_encoder_forward.1} parent=1 // loop_pre_header
      _
    $region3: #{conv1d_encoder_forward.1} parent=1 // loop_header
      %s14 = sphi 0, %s18
      %p15 = scmp.ge.s32.totalorder %s14, 4
      %s21 = sphi 0, %s33
      %s22 = sphi 0, %s29
      %s23 = sphi 0, %s21
      %s24 = sphi 0, %s22
      %s25 = sphi 0, %s23
      %s26 = sphi 0, %s24
      %s38 = sphi 0, %s40
      %s41 = sphi 0, %s38
      %s42 = sphi 0, %s41
      %s58 = sphi 0, %s42
      %s70 = sphi 0, %s72
      %s73 = sphi 0, %s70
      %s74 = sphi 0, %s73
      %s90 = sphi 0, %s74
      %s94 = sphi 0, %s94
      %s96 = sphi 0, %s94
      %s97 = sphi 0, %s96
      %s111 = sphi 0, %s97
      %s115 = sphi 0, %s115
      %s117 = sphi 0, %s115
      %s118 = sphi 0, %s117
      %s132 = sphi 0, %s118
      %s140 = sphi 0, %s142
      %s143 = sphi 0, %s140
      %s144 = sphi 0, %s143
      %s160 = sphi 0, %s144
      %s168 = sphi 0, %s170
      %s171 = sphi 0, %s168
      %s172 = sphi 0, %s171
      %s188 = sphi 0, %s172
    $region4: #{conv1d_encoder_forward.1} parent=1 // loop_header_branch
      %17 = sbr.rel (%p15) target = $region8
    $region5: #{conv1d_encoder_forward.1} parent=1 // loop_body
      %s19 = ssub.s32 %s14, 1
      %s20 = ssub.s32 %s14, 2
      %s27 = sadd.s32 1, %s22
      %p28 = scmp.ge.s32.totalorder %s27, 1
      %s29 = scalar_select %p28, 0, %s27
      %s30 = sadd.s32 1, %s21
      %s31 = scalar_select %p28, %s30, %s21
      %p32 = scmp.ge.s32.totalorder %s31, 2
      %s33 = scalar_select %p32, 0, %s31
      %s34 = ssub.s32 %s21, %s33
      %s35 = ssub.s32 %s22, %s29
      %s36 = sor.u32 %s34, %s35
      %p37 = scmp.eq.s32.totalorder %s36, 0
      %s39 = sadd.s32 %s38, 1
      %s40 = scalar_select %p37, %s38, %s39
      %p43 = pneg %p37
      %p44 = scmp.eq.s32.totalorder %s14, 1
      %p45 = por %p43, %p44
      %p46 = scmp.ne.s32.totalorder %s38, %s41
      %p47 = scmp.eq.s32.totalorder %s14, 0
      %p48 = por %p46, %p47
      %p49 = scmp.ne.s32.totalorder %s38, %s41
      %p50 = scmp.eq.s32.totalorder %s19, 1
      %p51 = por %p49, %p50
      %p52 = scmp.ne.s32.totalorder %s41, %s42
      %p53 = scmp.eq.s32.totalorder %s19, 0
      %p54 = por %p52, %p53
      %p55 = scmp.ne.s32.totalorder %s41, %s42
      %p56 = scmp.eq.s32.totalorder %s20, 1
      %p57 = por %p55, %p56
      %p59 = scmp.ne.s32.totalorder %s42, %s58
      %p60 = scmp.eq.s32.totalorder %s20, 0
      %p61 = por %p59, %p60
      %s62 = sadd.s32 %s22, 1
      %s63 = smul.u32 %s62, 2
      %s64 = sadd.s32 %s29, 1
      %s65 = smul.u32 %s64, 2
      %s66 = ssub.s32 %s21, %s33
      %s67 = ssub.s32 %s63, %s65
      %s68 = sor.u32 %s66, %s67
      %p69 = scmp.eq.s32.totalorder %s68, 0
      %s71 = sadd.s32 %s70, 1
      %s72 = scalar_select %p69, %s70, %s71
      %p75 = pneg %p69
      %p76 = scmp.eq.s32.totalorder %s14, 1
      %p77 = por %p75, %p76
      %p78 = scmp.ne.s32.totalorder %s70, %s73
      %p79 = scmp.eq.s32.totalorder %s14, 0
      %p80 = por %p78, %p79
      %p81 = scmp.ne.s32.totalorder %s70, %s73
      %p82 = scmp.eq.s32.totalorder %s19, 1
      %p83 = por %p81, %p82
      %p84 = scmp.ne.s32.totalorder %s73, %s74
      %p85 = scmp.eq.s32.totalorder %s19, 0
      %p86 = por %p84, %p85
      %p87 = scmp.ne.s32.totalorder %s73, %s74
      %p88 = scmp.eq.s32.totalorder %s20, 1
      %p89 = por %p87, %p88
      %p91 = scmp.ne.s32.totalorder %s74, %s90
      %p92 = scmp.eq.s32.totalorder %s20, 0
      %p93 = por %p91, %p92
      %s95 = sadd.s32 %s94, 1
      %p98 = scmp.eq.s32.totalorder %s14, 1
      %p99 = scmp.ne.s32.totalorder %s94, %s96
      %p100 = scmp.eq.s32.totalorder %s14, 0
      %p101 = por %p99, %p100
      %p102 = scmp.ne.s32.totalorder %s94, %s96
      %p103 = scmp.eq.s32.totalorder %s19, 1
      %p104 = por %p102, %p103
      %p105 = scmp.ne.s32.totalorder %s96, %s97
      %p106 = scmp.eq.s32.totalorder %s19, 0
      %p107 = por %p105, %p106
      %p108 = scmp.ne.s32.totalorder %s96, %s97
      %p109 = scmp.eq.s32.totalorder %s20, 1
      %p110 = por %p108, %p109
      %p112 = scmp.ne.s32.totalorder %s97, %s111
      %p113 = scmp.eq.s32.totalorder %s20, 0
      %p114 = por %p112, %p113
      %s116 = sadd.s32 %s115, 1
      %p119 = scmp.eq.s32.totalorder %s14, 1
      %p120 = scmp.ne.s32.totalorder %s115, %s117
      %p121 = scmp.eq.s32.totalorder %s14, 0
      %p122 = por %p120, %p121
      %p123 = scmp.ne.s32.totalorder %s115, %s117
      %p124 = scmp.eq.s32.totalorder %s19, 1
      %p125 = por %p123, %p124
      %p126 = scmp.ne.s32.totalorder %s117, %s118
      %p127 = scmp.eq.s32.totalorder %s19, 0
      %p128 = por %p126, %p127
      %p129 = scmp.ne.s32.totalorder %s117, %s118
      %p130 = scmp.eq.s32.totalorder %s20, 1
      %p131 = por %p129, %p130
      %p133 = scmp.ne.s32.totalorder %s118, %s132
      %p134 = scmp.eq.s32.totalorder %s20, 0
      %p135 = por %p133, %p134
      %s136 = ssub.s32 %s21, %s33
      %s137 = ssub.s32 %s22, %s29
      %s138 = sor.u32 %s136, %s137
      %p139 = scmp.eq.s32.totalorder %s138, 0
      %s141 = sadd.s32 %s140, 1
      %s142 = scalar_select %p139, %s140, %s141
      %p145 = pneg %p139
      %p146 = scmp.eq.s32.totalorder %s14, 1
      %p147 = por %p145, %p146
      %p148 = scmp.ne.s32.totalorder %s140, %s143
      %p149 = scmp.eq.s32.totalorder %s14, 0
      %p150 = por %p148, %p149
      %p151 = scmp.ne.s32.totalorder %s140, %s143
      %p152 = scmp.eq.s32.totalorder %s19, 1
      %p153 = por %p151, %p152
      %p154 = scmp.ne.s32.totalorder %s143, %s144
      %p155 = scmp.eq.s32.totalorder %s19, 0
      %p156 = por %p154, %p155
      %p157 = scmp.ne.s32.totalorder %s143, %s144
      %p158 = scmp.eq.s32.totalorder %s20, 1
      %p159 = por %p157, %p158
      %p161 = scmp.ne.s32.totalorder %s144, %s160
      %p162 = scmp.eq.s32.totalorder %s20, 0
      %p163 = por %p161, %p162
      %s164 = ssub.s32 %s21, %s33
      %s165 = ssub.s32 %s22, %s29
      %s166 = sor.u32 %s164, %s165
      %p167 = scmp.eq.s32.totalorder %s166, 0
      %s169 = sadd.s32 %s168, 1
      %s170 = scalar_select %p167, %s168, %s169
      %p173 = pneg %p167
      %p174 = scmp.eq.s32.totalorder %s14, 1
      %p175 = por %p173, %p174
      %p176 = scmp.ne.s32.totalorder %s168, %s171
      %p177 = scmp.eq.s32.totalorder %s14, 0
      %p178 = por %p176, %p177
      %p179 = scmp.ne.s32.totalorder %s168, %s171
      %p180 = scmp.eq.s32.totalorder %s19, 1
      %p181 = por %p179, %p180
      %p182 = scmp.ne.s32.totalorder %s171, %s172
      %p183 = scmp.eq.s32.totalorder %s19, 0
      %p184 = por %p182, %p183
      %p185 = scmp.ne.s32.totalorder %s171, %s172
      %p186 = scmp.eq.s32.totalorder %s20, 1
      %p187 = por %p185, %p186
      %p189 = scmp.ne.s32.totalorder %s172, %s188
      %p190 = scmp.eq.s32.totalorder %s20, 0
      %p191 = por %p189, %p190
      %p192 = scmp.le.s32.totalorder 1, %s14
      %p193 = scmp.lt.s32.totalorder %s14, 3
      %p194 = pnand %p192, %p193
      %p195 = pneg %p194
      // Predicated region
      $region9: #{conv1d_encoder_forward.1} parent=5 // pred_check
        _
      $region10: #{conv1d_encoder_forward.1} parent=5 // pred_check_branch
        %197 = sbr.rel (%p194) target = $region12
      $region11: #{conv1d_encoder_forward.1} parent=5 // pred_region
        %s198 = ssub.s32 %s14, 1
        // Predicated region
        $region13: #{conv1d_encoder_forward.1} parent=11 // pred_check
          %p199 = pneg %p107
        $region14: #{conv1d_encoder_forward.1} parent=11 // pred_check_branch
          %201 = sbr.rel (%p199) target = $region16
        $region15: #{conv1d_encoder_forward.1} parent=11 // pred_region
          _
        $region16: #{conv1d_encoder_forward.1} parent=11 // pred_fallthru
          _
        // Predicated region
        $region17: #{conv1d_encoder_forward.1} parent=11 // pred_check
          %p202 = pneg %p128
        $region18: #{conv1d_encoder_forward.1} parent=11 // pred_check_branch
          %204 = sbr.rel (%p202) target = $region20
        $region19: #{conv1d_encoder_forward.1} parent=11 // pred_region
          _
        $region20: #{conv1d_encoder_forward.1} parent=11 // pred_fallthru
          _
      $region12: #{conv1d_encoder_forward.1} parent=5 // pred_fallthru
        _
      %p205 = scmp.lt.s32.totalorder %s14, 2
      // Predicated region
      $region21: #{conv1d_encoder_forward.1} parent=5 // pred_check
        %p206 = pneg %p205
      $region22: #{conv1d_encoder_forward.1} parent=5 // pred_check_branch
        %208 = sbr.rel (%p206) target = $region24
      $region23: #{conv1d_encoder_forward.1} parent=5 // pred_region
        // Predicated region
        $region25: #{conv1d_encoder_forward.1} parent=23 // pred_check
          %p209 = pneg %p48
        $region26: #{conv1d_encoder_forward.1} parent=23 // pred_check_branch
          %211 = sbr.rel (%p209) target = $region28
        $region27: #{conv1d_encoder_forward.1} parent=23 // pred_region
          %s212 = smul.u32 2, %s22
          %s213 = ssub.s32 3, %s212
          %p214 = scmp.lt.s32.totalorder %s213, 2
          %s215 = scalar_select %p214, %s213, 2
          %s216 = smul.u32 128, %s215
          %p217 = scmp.lt.s32.totalorder %s21, 1
          %s218 = scalar_select %p217, %s21, 1
          %p219 = scmp.lt.s32.totalorder %s212, 2
          %s220 = scalar_select %p219, %s212, 2
          %s221 = smul.addr %s218, 3
          %s222 = sadd.s32 %s220, %s221
          %s223 = smul.addr %s222, 8
          %s224 = scalar_lea.vmem %s0, %s223
          %s225 = smul.u32 2, %s22
          %s226 = ssub.s32 3, %s225
          %p227 = scmp.lt.s32.totalorder %s226, 2
          %s228 = scalar_select %p227, %s226, 2
          %s229 = smul.u32 128, %s228
        $region28: #{conv1d_encoder_forward.1} parent=23 // pred_fallthru
          _
        // Predicated region
        $region29: #{conv1d_encoder_forward.1} parent=23 // pred_check
          %p230 = pneg %p80
        $region30: #{conv1d_encoder_forward.1} parent=23 // pred_check_branch
          %232 = sbr.rel (%p230) target = $region32
        $region31: #{conv1d_encoder_forward.1} parent=23 // pred_region
          %s233 = sadd.s32 %s22, 1
          %s234 = smul.u32 %s233, 2
          %p235 = scmp.lt.s32.totalorder %s21, 1
          %s236 = scalar_select %p235, %s21, 1
          %p237 = scmp.lt.s32.totalorder %s234, 2
          %s238 = scalar_select %p237, %s234, 2
          %s239 = smul.addr %s236, 3
          %s240 = sadd.s32 %s238, %s239
          %s241 = smul.addr %s240, 8
          %s242 = scalar_lea.vmem %s1, %s241
          %s243 = sadd.s32 %s22, 1
          %s244 = smul.u32 %s243, 2
        $region32: #{conv1d_encoder_forward.1} parent=23 // pred_fallthru
          _
        // Predicated region
        $region33: #{conv1d_encoder_forward.1} parent=23 // pred_check
          %p245 = pneg %p150
        $region34: #{conv1d_encoder_forward.1} parent=23 // pred_check_branch
          %247 = sbr.rel (%p245) target = $region36
        $region35: #{conv1d_encoder_forward.1} parent=23 // pred_region
          %s248 = smul.u32 2, %s22
          %p249 = scmp.lt.s32.totalorder %s21, 1
          %s250 = scalar_select %p249, %s21, 1
          %p251 = scmp.lt.s32.totalorder %s248, 1
          %s252 = scalar_select %p251, %s248, 1
          %s253 = smul.addr %s250, 2
          %s254 = sadd.s32 %s252, %s253
          %s255 = smul.addr %s254, 8
          %s256 = scalar_lea.vmem %s4, %s255
          %s257 = smul.u32 2, %s22
        $region36: #{conv1d_encoder_forward.1} parent=23 // pred_fallthru
          _
      $region24: #{conv1d_encoder_forward.1} parent=5 // pred_fallthru
        _
      %p258 = scmp.le.s32.totalorder 1, %s14
      %p259 = scmp.lt.s32.totalorder %s14, 3
      %p260 = pnand %p258, %p259
      %p261 = pneg %p260
      // Predicated region
      $region37: #{conv1d_encoder_forward.1} parent=5 // pred_check
        _
      $region38: #{conv1d_encoder_forward.1} parent=5 // pred_check_branch
        %263 = sbr.rel (%p260) target = $region40
      $region39: #{conv1d_encoder_forward.1} parent=5 // pred_region
        %s264 = ssub.s32 %s14, 1
        %s265 = smul.u32 2, %s24
        %s266 = ssub.s32 3, %s265
        %p267 = scmp.lt.s32.totalorder %s266, 2
        %s268 = scalar_select %p267, %s266, 2
        %s269 = smul.u32 128, %s268
        %p270 = scmp.lt.s32.totalorder %s23, 1
        %s271 = scalar_select %p270, %s23, 1
        %p272 = scmp.lt.s32.totalorder %s265, 2
        %s273 = scalar_select %p272, %s265, 2
        %s274 = smul.addr %s271, 3
        %s275 = sadd.s32 %s273, %s274
        %s276 = smul.addr %s275, 8
        %s277 = scalar_lea.vmem %s0, %s276
        %p278 = pneg %p54
        %p279 = pneg %p51
        %s280 = sadd.s32 %s24, 1
        %s281 = smul.u32 %s280, 2
        %p282 = scmp.lt.s32.totalorder %s23, 1
        %s283 = scalar_select %p282, %s23, 1
        %p284 = scmp.lt.s32.totalorder %s281, 2
        %s285 = scalar_select %p284, %s281, 2
        %s286 = smul.addr %s283, 3
        %s287 = sadd.s32 %s285, %s286
        %s288 = smul.addr %s287, 8
        %s289 = scalar_lea.vmem %s1, %s288
        %p290 = pneg %p86
        %p291 = pneg %p83
        %p292 = pneg %p107
        %p293 = pneg %p104
        %p294 = pneg %p128
        %p295 = pneg %p125
        %s296 = smul.u32 2, %s24
        %p297 = scmp.lt.s32.totalorder %s23, 1
        %s298 = scalar_select %p297, %s23, 1
        %p299 = scmp.lt.s32.totalorder %s296, 1
        %s300 = scalar_select %p299, %s296, 1
        %s301 = smul.addr %s298, 2
        %s302 = sadd.s32 %s300, %s301
        %s303 = smul.addr %s302, 8
        %s304 = scalar_lea.vmem %s4, %s303
        %p305 = pneg %p156
        %p306 = pneg %p153
        %p307 = pneg %p184
        %p308 = pneg %p181
        %s309 = sand.u32 %s171, 1
        %s310 = scalar_lea.sflag [#allocation3], %s309
        %s311 = sand.u32 %s171, 1
        %s312 = smul.addr %s311, 16
        %s313 = scalar_lea.vmem [#allocation2], %s312
        %s314 = smul.u32 2, %s24
        %s315 = ssub.s32 3, %s314
        %p316 = scmp.lt.s32.totalorder %s315, 2
        %s317 = scalar_select %p316, %s315, 2
        %s318 = smul.u32 128, %s317
        %p319 = scmp.lt.s32.totalorder %s23, 1
        %s320 = scalar_select %p319, %s23, 1
        %p321 = scmp.lt.s32.totalorder %s314, 2
        %s322 = scalar_select %p321, %s314, 2
        %s323 = smul.addr %s320, 3
        %s324 = sadd.s32 %s322, %s323
        %s325 = smul.addr %s324, 8
        %s326 = scalar_lea.vmem %s0, %s325
        %s327 = smul.u32 2, %s24
        %s328 = ssub.s32 3, %s327
        %p329 = scmp.lt.s32.totalorder %s328, 2
        %s330 = scalar_select %p329, %s328, 2
        %s331 = smul.u32 128, %s330
        %s332 = sadd.s32 %s24, 1
        %s333 = smul.u32 %s332, 2
        %p334 = scmp.lt.s32.totalorder %s23, 1
        %s335 = scalar_select %p334, %s23, 1
        %p336 = scmp.lt.s32.totalorder %s333, 2
        %s337 = scalar_select %p336, %s333, 2
        %s338 = smul.addr %s335, 3
        %s339 = sadd.s32 %s337, %s338
        %s340 = smul.addr %s339, 8
        %s341 = scalar_lea.vmem %s1, %s340
        %s342 = sadd.s32 %s24, 1
        %s343 = smul.u32 %s342, 2
        %s344 = smul.u32 2, %s24
        %p345 = scmp.lt.s32.totalorder %s23, 1
        %s346 = scalar_select %p345, %s23, 1
        %p347 = scmp.lt.s32.totalorder %s344, 1
        %s348 = scalar_select %p347, %s344, 1
        %s349 = smul.addr %s346, 2
        %s350 = sadd.s32 %s348, %s349
        %s351 = smul.addr %s350, 8
        %s352 = scalar_lea.vmem %s4, %s351
        %s353 = smul.u32 2, %s24
        %s354 = smul.u32 2, %s24
        %v355 = vld [vmem:[%s326] sm:$0xff]
        %v356 = vld [vmem:[%s326 + $0x8] sm:$0xff]
        %v357 = vld [vmem:[%s341] sm:$0xff]
        %vm361 = vcmask 1046528
        %v362 = vrot.slane %v355, 1
        %v363 = vrot.slane %v356, 1
        %v364 = vsel %vm361, %v362, %v363
        %v365 = vrot.slane %v357, 1
        %v366 = vsel %vm361, %v363, %v365
        %vm369 = vcmask 1045504
        %v370 = vrot.slane %v355, 2
        %v371 = vrot.slane %v356, 2
        %v372 = vsel %vm369, %v370, %v371
        %v373 = vrot.slane %v357, 2
        %v374 = vsel %vm369, %v371, %v373
        %v377 = vld [vmem:[%s2] sm:$0xff]
        %v378 = vld [vmem:[%s2 + $0x8] sm:$0xff]
        %v379 = vld [vmem:[%s2 + $0x10] sm:$0xff]
        %v380 = vld [vmem:[%s2 + $0x18] sm:$0xff]
        %v381 = vld [vmem:[%s2 + $0x20] sm:$0xff]
        %v382 = vld [vmem:[%s2 + $0x28] sm:$0xff]
        %v383 = vld [vmem:[%s2 + $0x30] sm:$0xff]
        %v384 = vld [vmem:[%s2 + $0x38] sm:$0xff]
        %v385 = vld [vmem:[%s2 + $0x40] sm:$0xff]
        %v386 = vld [vmem:[%s2 + $0x48] sm:$0xff]
        %v387 = vld [vmem:[%s2 + $0x50] sm:$0xff]
        %v388 = vld [vmem:[%s2 + $0x58] sm:$0xff]
        %v389 = vld [vmem:[%s2 + $0x60] sm:$0xff]
        %v390 = vld [vmem:[%s2 + $0x68] sm:$0xff]
        %v391 = vld [vmem:[%s2 + $0x70] sm:$0xff]
        %v392 = vld [vmem:[%s2 + $0x78] sm:$0xff]
        %v393 = vld [vmem:[%s2 + $0x80] sm:$0xff]
        %v394 = vld [vmem:[%s2 + $0x88] sm:$0xff]
        %v395 = vld [vmem:[%s2 + $0x90] sm:$0xff]
        %v396 = vld [vmem:[%s2 + $0x98] sm:$0xff]
        %v397 = vld [vmem:[%s2 + $0xa0] sm:$0xff]
        %v398 = vld [vmem:[%s2 + $0xa8] sm:$0xff]
        %v399 = vld [vmem:[%s2 + $0xb0] sm:$0xff]
        %v400 = vld [vmem:[%s2 + $0xb8] sm:$0xff]
        %v401 = vld [vmem:[%s2 + $0xc0] sm:$0xff]
        %v402 = vld [vmem:[%s2 + $0xc8] sm:$0xff]
        %v403 = vld [vmem:[%s2 + $0xd0] sm:$0xff]
        %v404 = vld [vmem:[%s2 + $0xd8] sm:$0xff]
        %v405 = vld [vmem:[%s2 + $0xe0] sm:$0xff]
        %v406 = vld [vmem:[%s2 + $0xe8] sm:$0xff]
        %v407 = vld [vmem:[%s2 + $0xf0] sm:$0xff]
        %v408 = vld [vmem:[%s2 + $0xf8] sm:$0xff]
        %v409 = vld [vmem:[%s2 + $0x100] sm:$0xff]
        %v410 = vld [vmem:[%s2 + $0x108] sm:$0xff]
        %v411 = vld [vmem:[%s2 + $0x110] sm:$0xff]
        %v412 = vld [vmem:[%s2 + $0x118] sm:$0xff]
        %v413 = vld [vmem:[%s2 + $0x120] sm:$0xff]
        %v414 = vld [vmem:[%s2 + $0x128] sm:$0xff]
        %v415 = vld [vmem:[%s2 + $0x130] sm:$0xff]
        %v416 = vld [vmem:[%s2 + $0x138] sm:$0xff]
        %v417 = vld [vmem:[%s2 + $0x140] sm:$0xff]
        %v418 = vld [vmem:[%s2 + $0x148] sm:$0xff]
        %v419 = vld [vmem:[%s2 + $0x150] sm:$0xff]
        %v420 = vld [vmem:[%s2 + $0x158] sm:$0xff]
        %v421 = vld [vmem:[%s2 + $0x160] sm:$0xff]
        %v422 = vld [vmem:[%s2 + $0x168] sm:$0xff]
        %v423 = vld [vmem:[%s2 + $0x170] sm:$0xff]
        %v424 = vld [vmem:[%s2 + $0x178] sm:$0xff]
        %v425 = vld [vmem:[%s3] sm:$0x1]
        %v427 = vlaneseq
        %v428 = vshrl.u32 %v427, 7
        %v429 = vsub.s32 0, %v428
        %v430 = vrot.slane %v425, %v429
        %432 = vmatprep.subr.mxu0 0.0
        %433 = vmatpush1.msra.mxu0 %v377
        %434 = vmatprep.subr.mxu0 0.0
        %435 = vmatpush1.msra.mxu0 %v378
        %436 = vmatprep.subr.mxu0 0.0
        %437 = vmatpush1.msra.mxu0 %v379
        %438 = vmatprep.subr.mxu0 0.0
        %439 = vmatpush1.msra.mxu0 %v380
        %440 = vmatprep.subr.mxu0 0.0
        %441 = vmatpush1.msra.mxu0 %v381
        %442 = vmatprep.subr.mxu0 0.0
        %443 = vmatpush1.msra.mxu0 %v382
        %444 = vmatprep.subr.mxu0 0.0
        %445 = vmatpush1.msra.mxu0 %v383
        %446 = vmatprep.subr.mxu0 0.0
        %447 = vmatpush1.msra.mxu0 %v384
        %448 = vmatprep.subr.mxu0 0.0
        %449 = vmatpush1.msra.mxu0 %v385
        %450 = vmatprep.subr.mxu0 0.0
        %451 = vmatpush1.msra.mxu0 %v386
        %452 = vmatprep.subr.mxu0 0.0
        %453 = vmatpush1.msra.mxu0 %v387
        %454 = vmatprep.subr.mxu0 0.0
        %455 = vmatpush1.msra.mxu0 %v388
        %456 = vmatprep.subr.mxu0 0.0
        %457 = vmatpush1.msra.mxu0 %v389
        %458 = vmatprep.subr.mxu0 0.0
        %459 = vmatpush1.msra.mxu0 %v390
        %460 = vmatprep.subr.mxu0 0.0
        %461 = vmatpush1.msra.mxu0 %v391
        %462 = vmatprep.subr.mxu0 0.0
        %463 = vmatpush1.msra.mxu0 %v392
        %464 = vmatprep.subr.mxu0 0.0
        %465 = vmatpush1.msra.mxu0 %v393
        %466 = vmatprep.subr.mxu0 0.0
        %467 = vmatpush1.msra.mxu0 %v394
        %468 = vmatprep.subr.mxu0 0.0
        %469 = vmatpush1.msra.mxu0 %v395
        %470 = vmatprep.subr.mxu0 0.0
        %471 = vmatpush1.msra.mxu0 %v396
        %472 = vmatprep.subr.mxu0 0.0
        %473 = vmatpush1.msra.mxu0 %v397
        %474 = vmatprep.subr.mxu0 0.0
        %475 = vmatpush1.msra.mxu0 %v398
        %476 = vmatprep.subr.mxu0 0.0
        %477 = vmatpush1.msra.mxu0 %v399
        %478 = vmatprep.subr.mxu0 0.0
        %479 = vmatpush1.msra.mxu0 %v400
        %480 = vmatprep.subr.mxu0 0.0
        %481 = vmatpush1.msra.mxu0 %v401
        %482 = vmatprep.subr.mxu0 0.0
        %483 = vmatpush1.msra.mxu0 %v402
        %484 = vmatprep.subr.mxu0 0.0
        %485 = vmatpush1.msra.mxu0 %v403
        %486 = vmatprep.subr.mxu0 0.0
        %487 = vmatpush1.msra.mxu0 %v404
        %488 = vmatprep.subr.mxu0 0.0
        %489 = vmatpush1.msra.mxu0 %v405
        %490 = vmatprep.subr.mxu0 0.0
        %491 = vmatpush1.msra.mxu0 %v406
        %492 = vmatprep.subr.mxu0 0.0
        %493 = vmatpush1.msra.mxu0 %v407
        %494 = vmatprep.subr.mxu0 0.0
        %495 = vmatpush1.msra.mxu0 %v408
        %496 = vmatprep.mubr.f32.mxu0 %v364
        %497 = vmatmul.mubr.f32.gmra.mrb[0].mxu0 %v355
        %v498 = vpop.f32.mrb[0].mxu0
        %v499 = vadd.f32 %v430, %v498
        %v500 = vpop.f32.mrb[0].mxu0
        %501 = vmatprep.mubr.f32.mxu0 %v366
        %502 = vmatmul.mubr.f32.gmra.mrb[0].mxu0 %v356
        %v503 = vpop.f32.mrb[0].mxu0
        %v504 = vadd.f32 %v430, %v503
        %v505 = vpop.f32.mrb[0].mxu0
        %506 = vdwg.mxu0
        %507 = vmatprep.subr.mxu0 0.0
        %508 = vmatpush1.msra.mxu0 %v409
        %509 = vmatprep.subr.mxu0 0.0
        %510 = vmatpush1.msra.mxu0 %v410
        %511 = vmatprep.subr.mxu0 0.0
        %512 = vmatpush1.msra.mxu0 %v411
        %513 = vmatprep.subr.mxu0 0.0
        %514 = vmatpush1.msra.mxu0 %v412
        %515 = vmatprep.subr.mxu0 0.0
        %516 = vmatpush1.msra.mxu0 %v413
        %517 = vmatprep.subr.mxu0 0.0
        %518 = vmatpush1.msra.mxu0 %v414
        %519 = vmatprep.subr.mxu0 0.0
        %520 = vmatpush1.msra.mxu0 %v415
        %521 = vmatprep.subr.mxu0 0.0
        %522 = vmatpush1.msra.mxu0 %v416
        %523 = vmatprep.subr.mxu0 0.0
        %524 = vmatpush1.msra.mxu0 %v417
        %525 = vmatprep.subr.mxu0 0.0
        %526 = vmatpush1.msra.mxu0 %v418
        %527 = vmatprep.subr.mxu0 0.0
        %528 = vmatpush1.msra.mxu0 %v419
        %529 = vmatprep.subr.mxu0 0.0
        %530 = vmatpush1.msra.mxu0 %v420
        %531 = vmatprep.subr.mxu0 0.0
        %532 = vmatpush1.msra.mxu0 %v421
        %533 = vmatprep.subr.mxu0 0.0
        %534 = vmatpush1.msra.mxu0 %v422
        %535 = vmatprep.subr.mxu0 0.0
        %536 = vmatpush1.msra.mxu0 %v423
        %537 = vmatprep.subr.mxu0 0.0
        %538 = vmatpush1.msra.mxu0 %v424
        %539 = vmatprep.subr.mxu0 0.0
        %540 = vmatpush1.msra.mxu0 0.0
        %541 = vmatprep.subr.mxu0 0.0
        %542 = vmatpush1.msra.mxu0 0.0
        %543 = vmatprep.subr.mxu0 0.0
        %544 = vmatpush1.msra.mxu0 0.0
        %545 = vmatprep.subr.mxu0 0.0
        %546 = vmatpush1.msra.mxu0 0.0
        %547 = vmatprep.subr.mxu0 0.0
        %548 = vmatpush1.msra.mxu0 0.0
        %549 = vmatprep.subr.mxu0 0.0
        %550 = vmatpush1.msra.mxu0 0.0
        %551 = vmatprep.subr.mxu0 0.0
        %552 = vmatpush1.msra.mxu0 0.0
        %553 = vmatprep.subr.mxu0 0.0
        %554 = vmatpush1.msra.mxu0 0.0
        %555 = vmatprep.subr.mxu0 0.0
        %556 = vmatpush1.msra.mxu0 0.0
        %557 = vmatprep.subr.mxu0 0.0
        %558 = vmatpush1.msra.mxu0 0.0
        %559 = vmatprep.subr.mxu0 0.0
        %560 = vmatpush1.msra.mxu0 0.0
        %561 = vmatprep.subr.mxu0 0.0
        %562 = vmatpush1.msra.mxu0 0.0
        %563 = vmatprep.subr.mxu0 0.0
        %564 = vmatpush1.msra.mxu0 0.0
        %565 = vmatprep.subr.mxu0 0.0
        %566 = vmatpush1.msra.mxu0 0.0
        %567 = vmatprep.subr.mxu0 0.0
        %568 = vmatpush1.msra.mxu0 0.0
        %569 = vmatprep.subr.mxu0 0.0
        %570 = vmatpush1.msra.mxu0 0.0
        %571 = vmatprep.mubr.f32.mxu0 0.0
        %572 = vmatmul.mubr.f32.gmra.mrb[0].mxu0 %v372
        %v573 = vpop.f32.mrb[0].mxu0
        %v574 = vadd.f32 %v499, %v573
        %v575 = vpop.f32.mrb[0].mxu0
        %576 = vmatprep.mubr.f32.mxu0 0.0
        %577 = vmatmul.mubr.f32.gmra.mrb[0].mxu0 %v374
        %v578 = vpop.f32.mrb[0].mxu0
        %v579 = vadd.f32 %v504, %v578
        %v580 = vpop.f32.mrb[0].mxu0
        %581 = vdwg.mxu0
        %v582 = vld [vmem:[%s352] sm:$0xff]
        %v583 = vld [vmem:[%s352 + $0x8] sm:$0xff]
        %585 = vset.pattern.permute.xlu0 0
        %586 = vperm.xlu0 %585, %v582
        %v587 = vpop.permute.xlu0 %586
        %590 = vset.pattern.permute.xlu0 0
        %591 = vperm.xlu0 %590, %v583
        %v592 = vpop.permute.xlu0 %591
        %v594 = vmul.f32 %v574, %v587
        %v595 = vmul.f32 %v579, %v592
        %596 = vst [vmem:[%s313] sm:$0xff] %v594
        %597 = vst [vmem:[%s313 + $0x8] sm:$0xff] %v595
        %s598 = sand.u32 %s171, 1
        %s599 = scalar_lea.sflag [#allocation3], %s598
        %s600 = sand.u32 %s171, 1
        %s601 = smul.addr %s600, 16
        %s602 = scalar_lea.vmem [#allocation2], %s601
        // Predicated region
        $region41: #{conv1d_encoder_forward.1} parent=39 // pred_check
          %p603 = pneg %p181
        $region42: #{conv1d_encoder_forward.1} parent=39 // pred_check_branch
          %605 = sbr.rel (%p603) target = $region44
        $region43: #{conv1d_encoder_forward.1} parent=39 // pred_region
          %s606 = smul.u32 2, %s24
          %s608 = ssub.s32 256, 256
          %609 = vsyncadd %s599, %s608
          %s610 = smul.addr %s23, 2
          %s611 = sadd.s32 %s606, %s610
          %s612 = smul.addr %s611, 128
          %s613 = scalar_lea.hbm %s5, %s612
          %s614 = sshll.u32 %s602, 4
          %s615 = int_to_ptr.vmem [resolvable:$true] %s614
          %620 = dma.vmem_to_hbm [thread:$0]  %s615, 256, %s613, %s599, 128, 128, 8
        $region44: #{conv1d_encoder_forward.1} parent=39 // pred_fallthru
          _
      $region40: #{conv1d_encoder_forward.1} parent=5 // pred_fallthru
        _
      %p621 = scmp.le.s32.totalorder 2, %s14
      // Predicated region
      $region45: #{conv1d_encoder_forward.1} parent=5 // pred_check
        %p622 = pneg %p621
      $region46: #{conv1d_encoder_forward.1} parent=5 // pred_check_branch
        %624 = sbr.rel (%p622) target = $region48
      $region47: #{conv1d_encoder_forward.1} parent=5 // pred_region
        %s625 = ssub.s32 %s14, 2
        // Predicated region
        $region49: #{conv1d_encoder_forward.1} parent=47 // pred_check
          %p626 = pneg %p187
        $region50: #{conv1d_encoder_forward.1} parent=47 // pred_check_branch
          %628 = sbr.rel (%p626) target = $region52
        $region51: #{conv1d_encoder_forward.1} parent=47 // pred_region
          %s629 = sand.u32 %s172, 1
          %s630 = scalar_lea.sflag [#allocation3], %s629
          %s631 = sand.u32 %s172, 1
          %s632 = smul.addr %s631, 16
          %s633 = scalar_lea.vmem [#allocation2], %s632
          %634 = dma.done %s630, 256
        $region52: #{conv1d_encoder_forward.1} parent=47 // pred_fallthru
          _
      $region48: #{conv1d_encoder_forward.1} parent=5 // pred_fallthru
        _
    $region6: #{conv1d_encoder_forward.1} parent=1 // loop_footer
      %s18 = sadd.s32 1, %s14
    $region7: #{conv1d_encoder_forward.1} parent=1 // loop_footer_branch
      %13 = sbr.rel target = $region3
    $region8: #{conv1d_encoder_forward.1} parent=1 // loop_exit
      _
    %635 = vsyncpa [#allocation3], 1
    %s636 = scalar_lea.sflag [#allocation3], 1
    %637 = vsyncpa %s636, 1

</llo_original>
